<compile_context>
chip_gen: v6e
topology: v6e:2x2x1
jax: 0.10.0
libtpu: 0.0.40
codegen_flags: <defaults>
</compile_context>

<pallas_src>
import functools

import jax
import jax.numpy as jnp
from jax.experimental import pallas as pl
from jax.experimental.pallas import tpu as pltpu


def _cdiv(a, b):
    return -(-a // b)


def _next_pow2(x):
    return 1 if x <= 1 else 1 << (x - 1).bit_length()


def _floor_pow2(x):
    return 1 if x <= 1 else 1 << (x.bit_length() - 1)


def _bce_iou_kernel(sm_ref, lb_ref, out_ref, *, binary_labels, hw, block_hw,
                    n_inner, need_mask):
    o = pl.program_id(1)
    k = pl.program_id(2)

    @pl.when(k == 0)
    def _init():
        out_ref[...] = jnp.zeros_like(out_ref)

    x = sm_ref[...].astype(jnp.float32)   # (block_nc, block_hw)
    y = lb_ref[...].astype(jnp.float32)   # (block_nc, block_hw)

    if need_mask:
        # Ragged HW tail / fully-OOB trailing grid cell: Pallas does not zero
        # out-of-bounds block data, so zero both inputs past the true hw.
        col0 = (o * n_inner + k) * block_hw
        col = col0 + jax.lax.broadcasted_iota(jnp.int32, x.shape, 1)
        valid = col < hw
        x = jnp.where(valid, x, 0.0)
        y = jnp.where(valid, y, 0.0)

    if binary_labels:
        # label is a 0/1 mask -> single log per element; zeroed tails give
        # p = 1 -> log p = 0 -> zero contribution.
        pos = y > 0.5
        p = jnp.where(pos, x, 1.0 - x)
        ll = jnp.maximum(jnp.log(p), -100.0)        # +log; negated in epilogue
        inter_e = jnp.where(pos, x, 0.0)
    else:
        # Exact PyTorch BCELoss two-log form (clamped at -100); soft labels OK.
        ll = (y * jnp.maximum(jnp.log(x), -100.0)
              + (1.0 - y) * jnp.maximum(jnp.log(1.0 - x), -100.0))
        inter_e = x * y
    union_e = x + y

    def lane_fold(a):
        # (block_nc, 128 * 2^m) -> (block_nc, 128) via pure VPU halving adds
        # on lane-tile-aligned slices (no XLU cross-lane reduce in the hot loop).
        w = a.shape[-1]
        while w > 128:
            w //= 2
            a = a[:, :w] + a[:, w:]
        return a

    # Output block index is constant across the inner (arbitrary) axis, so the
    # block stays resident in VMEM and acts as the accumulator.
    out_ref[0, 0, :, :] += lane_fold(inter_e)
    out_ref[1, 0, :, :] += lane_fold(union_e)
    out_ref[2, 0, :, :] += lane_fold(ll)


def bce_loss_pallas(sm, label, *, binary_labels=True, max_block_segs=None):
    """Equivalent of BCEloss.forward(sm, label) -> [total, mask, mask]."""
    n, c, h, w = sm.shape
    nc, hw = n * c, h * w

    # Contiguous reshape (free at the XLA level); keep the producer dtypes —
    # the f32 upcast happens in-kernel, so bf16/int8 labels would halve HBM traffic.
    sm2 = sm.reshape(nc, hw)
    lb2 = label.reshape(nc, hw)

    # ---- VMEM-aware sizing --------------------------------------------------
    try:
        vmem_cap = int(pltpu.get_tpu_info().vmem_capacity_bytes)
    except Exception:
        vmem_cap = 64 * 1024 * 1024            # conservative (v7x-sized) fallback
    vmem_limit = min(vmem_cap * 3 // 4, 100 * 1024 * 1024)
    # ~1/16 of the scoped limit per f32 block: leaves room for 2 inputs x 2
    # pipeline buffers plus the block-sized f32 elementwise temporaries.
    target_block_bytes = max(512 * 1024, vmem_limit // 16)

    # ---- rows: no padding — full NC, or an exact divisor for very large NC --
    if nc <= 512:
        block_nc = nc
    else:
        block_nc = nc                           # fallback: whole NC in one block
        cands = [512, 256, 128, 64, 32, 16]
        if sm2.dtype.itemsize >= 4 and lb2.dtype.itemsize >= 4:
            cands.append(8)
        for cand in cands:
            if nc % cand == 0:
                block_nc = cand
                break
    n_nc = nc // block_nc

    # ---- lanes: power-of-two multiple of 128 so the in-kernel fold is clean -
    segs_needed = _cdiv(hw, 128)
    target_segs = max(1, target_block_bytes // (block_nc * 4 * 128))
    nsegs = min(_next_pow2(segs_needed), _floor_pow2(target_segs))
    if max_block_segs is not None:              # test hook: force tiny HW tiles
        nsegs = min(nsegs, _floor_pow2(max_block_segs))
    nsegs = max(nsegs, 1)
    block_hw = nsegs * 128

    n_hw = _cdiv(hw, block_hw)
    n_outer = 2 if n_hw >= 2 else 1             # lets v7x's two TCs split HW
    n_inner = _cdiv(n_hw, n_outer)
    need_mask = (n_outer * n_inner * block_hw) != hw
    over = (n_outer * n_inner) > n_hw           # trailing grid cell is fully OOB

    if over:
        # Clamp to the last real block (re-read, fully masked in-kernel) so the
        # DMA never walks past the array.
        def in_map(i, o, k):
            return (i, jnp.minimum(o * n_inner + k, n_hw - 1))
    else:
        def in_map(i, o, k):
            return (i, o * n_inner + k)

    def out_map(i, o, k):
        return (0, o, i, 0)

    kernel = functools.partial(
        _bce_iou_kernel, binary_labels=binary_labels, hw=hw,
        block_hw=block_hw, n_inner=n_inner, need_mask=need_mask)

    bytes_per_elem = sm2.dtype.itemsize + lb2.dtype.itemsize
    cost = pl.CostEstimate(
        flops=10 * nc * hw,
        transcendentals=nc * hw,
        bytes_accessed=bytes_per_elem * nc * hw + 3 * n_outer * nc * 128 * 4,
    )

    partials = pl.pallas_call(
        kernel,
        out_shape=jax.ShapeDtypeStruct((3, n_outer, nc, 128), jnp.float32),
        grid_spec=pltpu.PrefetchScalarGridSpec(
            num_scalar_prefetch=0,
            grid=(n_nc, n_outer, n_inner),
            in_specs=[
                pl.BlockSpec((block_nc, block_hw), in_map),
                pl.BlockSpec((block_nc, block_hw), in_map),
            ],
            out_specs=pl.BlockSpec((3, 1, block_nc, 128), out_map),
        ),
        compiler_params=pltpu.CompilerParams(
            dimension_semantics=("parallel", "parallel", "arbitrary"),
            vmem_limit_bytes=vmem_limit,
        ),
        cost_estimate=cost,
    )(sm2, lb2)

    # ---- tiny JAX epilogue: lane/outer sums, sign, divides, wiou ------------
    inter = jnp.sum(partials[0], axis=(0, 2))            # (nc,)
    union = jnp.sum(partials[1], axis=(0, 2))            # (nc,)
    bce_mean = -jnp.sum(partials[2]) / (nc * hw)
    wiou = 1.0 - (inter + 1.0) / (union - inter + 1.0)
    total = bce_mean + 0.6 * jnp.mean(wiou)

    mask_loss = total
    return [total, mask_loss, mask_loss]


def _reference(sm, label):
    # pure-JAX reference (exact PyTorch BCELoss two-log form + iou term)
    x = sm.astype(jnp.float32)
    y = label.astype(jnp.float32)
    bce = jnp.mean(-(y * jnp.maximum(jnp.log(x), -100.0)
                     + (1.0 - y) * jnp.maximum(jnp.log(1.0 - x), -100.0)))
    inter = (x * y).sum(axis=(2, 3))
    union = (x + y).sum(axis=(2, 3))
    wiou = 1.0 - (inter + 1.0) / (union - inter + 1.0)
    return bce + 0.6 * wiou.mean()


if __name__ == "__main__":
    key = jax.random.PRNGKey(0)
    k1, k2 = jax.random.split(key)
    N, C, H, W = 2, 4, 16, 16

    # sm must be probabilities in (0, 1); label is a binary 0/1 mask
    sm = jax.nn.sigmoid(jax.random.normal(k1, (N, C, H, W), dtype=jnp.float32))
    label = (jax.random.uniform(k2, (N, C, H, W)) > 0.5).astype(jnp.float32)

    total, mask_loss, mask_loss2 = bce_loss_pallas(sm, label)
    jax.block_until_ready(total)

    ref = _reference(sm, label)
    assert jnp.allclose(total, ref, rtol=1e-5, atol=1e-5), (total, ref)
    assert jnp.allclose(mask_loss, total) and jnp.allclose(mask_loss2, total)

    # soft-label (two-log) path
    total_soft, _, _ = bce_loss_pallas(sm, label, binary_labels=False)
    jax.block_until_ready(total_soft)
    assert jnp.allclose(total_soft, ref, rtol=1e-5, atol=1e-5), (total_soft, ref)

    # ragged-HW mask path, HW_outer split with a partial tail block, and a
    # fully out-of-range trailing grid cell (forced tiny HW tiles).
    for shape, cap in (((1, 3, 15, 17), None), ((1, 2, 24, 40), 2), ((1, 2, 16, 40), 2)):
        ka, kb = jax.random.split(jax.random.PRNGKey(shape[-1]))
        s2 = jax.nn.sigmoid(jax.random.normal(ka, shape, dtype=jnp.float32))
        l2 = (jax.random.uniform(kb, shape) > 0.5).astype(jnp.float32)
        t2, _, _ = bce_loss_pallas(s2, l2, max_block_segs=cap)
        jax.block_until_ready(t2)
        r2 = _reference(s2, l2)
        assert jnp.allclose(t2, r2, rtol=1e-5, atol=1e-5), (shape, t2, r2)

    print("KERNEL_OK")
</pallas_src>

<mosaic_0001>
module attributes {stable_mosaic.version = 11 : i64} {
  func.func @_bce_iou_kernel(%arg0: i32, %arg1: i32, %arg2: i32, %arg3: memref<8x256xf32, #tpu.memory_space<vmem>>, %arg4: memref<8x256xf32, #tpu.memory_space<vmem>>, %arg5: memref<3x1x8x128xf32, #tpu.memory_space<vmem>>) attributes {dimension_semantics = [#tpu.dimension_semantics<parallel>, #tpu.dimension_semantics<parallel>, #tpu.dimension_semantics<arbitrary>], iteration_bounds = array<i64: 1, 1, 1>, scalar_prefetch = 0 : i64, scratch_operands = 0 : i64, tpu.core_type = #tpu.core_type<tc>, window_params = [{transform_indices = @transform_0, window_bounds = array<i64: 8, 256>}, {transform_indices = @transform_1, window_bounds = array<i64: 8, 256>}, {transform_indices = @transform_2, window_bounds = array<i64: 3, 1, 8, 128>}]} {
    %c0_i32 = arith.constant 0 : i32
    %0 = arith.cmpi eq, %arg2, %c0_i32 : i32
    %1 = arith.extui %0 : i1 to i32
    %c0_i32_0 = arith.constant 0 : i32
    %2 = arith.cmpi ne, %1, %c0_i32_0 : i32
    scf.if %2 {
      %cst_29 = arith.constant 0.000000e+00 : f32
      %43 = vector.broadcast %cst_29 : f32 to vector<3x1x8x128xf32>
      %c0_30 = arith.constant 0 : index
      %c0_31 = arith.constant 0 : index
      %c0_32 = arith.constant 0 : index
      %c0_33 = arith.constant 0 : index
      %44 = vector.load %arg5[%c0_30, %c0_31, %c0_32, %c0_33] : memref<3x1x8x128xf32, #tpu.memory_space<vmem>>, vector<3x1x8x128xf32>
      tpu.vector_store %arg5[%c0_30, %c0_31, %c0_32, %c0_33], %43 {strides = array<i32>} : memref<3x1x8x128xf32, #tpu.memory_space<vmem>>, vector<3x1x8x128xf32>,
    } else {
    }
    %c0 = arith.constant 0 : index
    %c0_1 = arith.constant 0 : index
    %3 = vector.load %arg3[%c0, %c0_1] : memref<8x256xf32, #tpu.memory_space<vmem>>, vector<8x256xf32>
    %c0_2 = arith.constant 0 : index
    %c0_3 = arith.constant 0 : index
    %4 = vector.load %arg4[%c0_2, %c0_3] : memref<8x256xf32, #tpu.memory_space<vmem>>, vector<8x256xf32>
    %cst = arith.constant 5.000000e-01 : f32
    %5 = vector.broadcast %cst : f32 to vector<8x256xf32>
    %6 = arith.cmpf ogt, %4, %5 : vector<8x256xf32>
    %cst_4 = arith.constant 1.000000e+00 : f32
    %7 = vector.broadcast %cst_4 : f32 to vector<8x256xf32>
    %8 = arith.subf %7, %3 : vector<8x256xf32>
    %9 = arith.select %6, %3, %8 : vector<8x256xi1>, vector<8x256xf32>
    %10 = math.log %9 : vector<8x256xf32>
    %cst_5 = arith.constant -1.000000e+02 : f32
    %11 = vector.broadcast %cst_5 : f32 to vector<8x256xf32>
    %12 = arith.maximumf %10, %11 : vector<8x256xf32>
    %cst_6 = arith.constant 0.000000e+00 : f32
    %13 = vector.broadcast %cst_6 : f32 to vector<8x256xf32>
    %14 = arith.select %6, %3, %13 : vector<8x256xi1>, vector<8x256xf32>
    %15 = arith.addf %3, %4 : vector<8x256xf32>
    %c0_7 = arith.constant 0 : index
    %c0_8 = arith.constant 0 : index
    %c0_9 = arith.constant 0 : index
    %c0_10 = arith.constant 0 : index
    %16 = vector.load %arg5[%c0_7, %c0_8, %c0_9, %c0_10] : memref<3x1x8x128xf32, #tpu.memory_space<vmem>>, vector<1x1x8x128xf32>
    %17 = vector.shape_cast %16 : vector<1x1x8x128xf32> to vector<8x128xf32>
    %18 = vector.extract_strided_slice %14 {offsets = [0, 0], sizes = [8, 128], strides = [1, 1]} : vector<8x256xf32> to vector<8x128xf32>
    %19 = vector.extract_strided_slice %14 {offsets = [0, 128], sizes = [8, 128], strides = [1, 1]} : vector<8x256xf32> to vector<8x128xf32>
    %20 = arith.addf %18, %19 : vector<8x128xf32>
    %21 = arith.addf %17, %20 : vector<8x128xf32>
    %c0_11 = arith.constant 0 : index
    %c0_12 = arith.constant 0 : index
    %c0_13 = arith.constant 0 : index
    %c0_14 = arith.constant 0 : index
    %22 = vector.load %arg5[%c0_11, %c0_12, %c0_13, %c0_14] : memref<3x1x8x128xf32, #tpu.memory_space<vmem>>, vector<1x1x8x128xf32>
    %23 = vector.shape_cast %22 : vector<1x1x8x128xf32> to vector<8x128xf32>
    %24 = vector.shape_cast %21 : vector<8x128xf32> to vector<1x1x8x128xf32>
    tpu.vector_store %arg5[%c0_11, %c0_12, %c0_13, %c0_14], %24 {strides = array<i32>} : memref<3x1x8x128xf32, #tpu.memory_space<vmem>>, vector<1x1x8x128xf32>,
    %c1 = arith.constant 1 : index
    %c0_15 = arith.constant 0 : index
    %c0_16 = arith.constant 0 : index
    %c0_17 = arith.constant 0 : index
    %25 = vector.load %arg5[%c1, %c0_15, %c0_16, %c0_17] : memref<3x1x8x128xf32, #tpu.memory_space<vmem>>, vector<1x1x8x128xf32>
    %26 = vector.shape_cast %25 : vector<1x1x8x128xf32> to vector<8x128xf32>
    %27 = vector.extract_strided_slice %15 {offsets = [0, 0], sizes = [8, 128], strides = [1, 1]} : vector<8x256xf32> to vector<8x128xf32>
    %28 = vector.extract_strided_slice %15 {offsets = [0, 128], sizes = [8, 128], strides = [1, 1]} : vector<8x256xf32> to vector<8x128xf32>
    %29 = arith.addf %27, %28 : vector<8x128xf32>
    %30 = arith.addf %26, %29 : vector<8x128xf32>
    %c1_18 = arith.constant 1 : index
    %c0_19 = arith.constant 0 : index
    %c0_20 = arith.constant 0 : index
    %c0_21 = arith.constant 0 : index
    %31 = vector.load %arg5[%c1_18, %c0_19, %c0_20, %c0_21] : memref<3x1x8x128xf32, #tpu.memory_space<vmem>>, vector<1x1x8x128xf32>
    %32 = vector.shape_cast %31 : vector<1x1x8x128xf32> to vector<8x128xf32>
    %33 = vector.shape_cast %30 : vector<8x128xf32> to vector<1x1x8x128xf32>
    tpu.vector_store %arg5[%c1_18, %c0_19, %c0_20, %c0_21], %33 {strides = array<i32>} : memref<3x1x8x128xf32, #tpu.memory_space<vmem>>, vector<1x1x8x128xf32>,
    %c2 = arith.constant 2 : index
    %c0_22 = arith.constant 0 : index
    %c0_23 = arith.constant 0 : index
    %c0_24 = arith.constant 0 : index
    %34 = vector.load %arg5[%c2, %c0_22, %c0_23, %c0_24] : memref<3x1x8x128xf32, #tpu.memory_space<vmem>>, vector<1x1x8x128xf32>
    %35 = vector.shape_cast %34 : vector<1x1x8x128xf32> to vector<8x128xf32>
    %36 = vector.extract_strided_slice %12 {offsets = [0, 0], sizes = [8, 128], strides = [1, 1]} : vector<8x256xf32> to vector<8x128xf32>
    %37 = vector.extract_strided_slice %12 {offsets = [0, 128], sizes = [8, 128], strides = [1, 1]} : vector<8x256xf32> to vector<8x128xf32>
    %38 = arith.addf %36, %37 : vector<8x128xf32>
    %39 = arith.addf %35, %38 : vector<8x128xf32>
    %c2_25 = arith.constant 2 : index
    %c0_26 = arith.constant 0 : index
    %c0_27 = arith.constant 0 : index
    %c0_28 = arith.constant 0 : index
    %40 = vector.load %arg5[%c2_25, %c0_26, %c0_27, %c0_28] : memref<3x1x8x128xf32, #tpu.memory_space<vmem>>, vector<1x1x8x128xf32>
    %41 = vector.shape_cast %40 : vector<1x1x8x128xf32> to vector<8x128xf32>
    %42 = vector.shape_cast %39 : vector<8x128xf32> to vector<1x1x8x128xf32>
    tpu.vector_store %arg5[%c2_25, %c0_26, %c0_27, %c0_28], %42 {strides = array<i32>} : memref<3x1x8x128xf32, #tpu.memory_space<vmem>>, vector<1x1x8x128xf32>,
    return
  }
  func.func @transform_0(%arg0: i32, %arg1: i32, %arg2: i32) -> (i32, i32) {
    %c1_i32 = arith.constant 1 : i32
    %0 = arith.muli %arg1, %c1_i32 : i32
    %1 = arith.addi %0, %arg2 : i32
    %c0_i32 = arith.constant 0 : i32
    return %arg0, %1 : i32, i32
  }
  func.func @transform_1(%arg0: i32, %arg1: i32, %arg2: i32) -> (i32, i32) {
    %c1_i32 = arith.constant 1 : i32
    %0 = arith.muli %arg1, %c1_i32 : i32
    %1 = arith.addi %0, %arg2 : i32
    %c0_i32 = arith.constant 0 : i32
    return %arg0, %1 : i32, i32
  }
  func.func @transform_2(%arg0: i32, %arg1: i32, %arg2: i32) -> (i32, i32, i32, i32) {
    %c0_i32 = arith.constant 0 : i32
    %c0_i32_0 = arith.constant 0 : i32
    %c0_i32_1 = arith.constant 0 : i32
    return %c0_i32, %arg1, %arg0, %c0_i32_0 : i32, i32, i32, i32
  }
}

</mosaic_0001>

<llo_original>
// kernel: tpu_custom_call.1
$region0: #{tpu_custom_call.1}
  #allocation0 [shape = 'u32[]', space=smem, size = 0x4, offset = 0x4, fixed_abs, tag = 'smem constant byte address 0x4 - core index']
  #allocation1 [shape = 'u32[144,128]{1,0:T(1,128)}', space=vmem, size = 0x12000, scoped, tag = 'internal scratch']
  %s0 = inlined_call_operand.hbm [shape: f32[8,256], index: 0, kind: input, shape index: {}]
  %s1 = inlined_call_operand.hbm [shape: f32[8,256], index: 1, kind: input, shape index: {}]
  %s2 = inlined_call_operand.hbm [shape: f32[3,1,8,128], index: 2, kind: output, shape index: {}]
  %s3 = sld [smem:[#allocation0]]
  $region30: #{tpu_custom_call.1} parent=0
    _
  %s5 = ssub.s32 1, %s3
  %s6 = scalar_select 0, %s5, %s3
  $region1: #{tpu_custom_call.1} parent=0
    #allocation2 [shape = 'u8[8192]{0}', space=vmem, size = 0x2000, scoped, tag = 'input window, operand 0, single buffered']
    #allocation3 [shape = 's32[1]{0}', space=sflag, size = 0x4, scoped, tag = 'scoped memory for tpu_custom_call.1']
    #allocation4 [shape = 's32[1]{0}', space=sflag, size = 0x4, scoped, tag = 'scoped memory for tpu_custom_call.1']
    #allocation5 [shape = 'u8[8192]{0}', space=vmem, size = 0x2000, scoped, tag = 'input window, operand 1, single buffered']
    #allocation6 [shape = 's32[1]{0}', space=sflag, size = 0x4, scoped, tag = 'scoped memory for tpu_custom_call.1']
    #allocation7 [shape = 'u8[12288]{0}', space=vmem, size = 0x3000, scoped, tag = 'output window, operand 0, single buffered']
    %7 = vsyncpa [#allocation3], 0
    %8 = vsyncpa [#allocation6], 0
    %9 = vsyncpa [#allocation4], 0
    // Predicated region
    $region2: #{tpu_custom_call.1} parent=1 // pred_check
      _
    $region3: #{tpu_custom_call.1} parent=1 // pred_check_branch
      %11 = sbr.rel (0) target = $region5
    $region4: #{tpu_custom_call.1} parent=1 // pred_region
      %s12 = sadd.s32 0, 0
      %s13 = smul.u32 2, %s12
      %s15 = ssub.s32 256, 256
      %16 = vsyncadd [#allocation3], %s15
      %s17 = smul.addr %s13, 128
      %s18 = scalar_lea.hbm %s0, %s17
      %s20 = sshll.u32 [#allocation2], 4
      %s21 = int_to_ptr.vmem [resolvable:$true] %s20
      %23 = dma.hbm_to_vmem [thread:$0]  %s18, 256, %s21, [#allocation3]
    $region5: #{tpu_custom_call.1} parent=1 // pred_fallthru
      _
    // Predicated region
    $region6: #{tpu_custom_call.1} parent=1 // pred_check
      _
    $region7: #{tpu_custom_call.1} parent=1 // pred_check_branch
      %25 = sbr.rel (0) target = $region9
    $region8: #{tpu_custom_call.1} parent=1 // pred_region
      %s26 = sadd.s32 0, 0
      %s27 = smul.u32 2, %s26
      %s29 = ssub.s32 256, 256
      %30 = vsyncadd [#allocation6], %s29
      %s31 = smul.addr %s27, 128
      %s32 = scalar_lea.hbm %s1, %s31
      %s34 = sshll.u32 [#allocation5], 4
      %s35 = int_to_ptr.vmem [resolvable:$true] %s34
      %37 = dma.hbm_to_vmem [thread:$0]  %s32, 256, %s35, [#allocation6]
    $region9: #{tpu_custom_call.1} parent=1 // pred_fallthru
      _
    // Predicated region
    $region10: #{tpu_custom_call.1} parent=1 // pred_check
      _
    $region11: #{tpu_custom_call.1} parent=1 // pred_check_branch
      %39 = sbr.rel (0) target = $region13
    $region12: #{tpu_custom_call.1} parent=1 // pred_region
      %40 = dma.done [#allocation3], 256
    $region13: #{tpu_custom_call.1} parent=1 // pred_fallthru
      _
    // Predicated region
    $region14: #{tpu_custom_call.1} parent=1 // pred_check
      _
    $region15: #{tpu_custom_call.1} parent=1 // pred_check_branch
      %42 = sbr.rel (0) target = $region17
    $region16: #{tpu_custom_call.1} parent=1 // pred_region
      %43 = dma.done [#allocation6], 256
    $region17: #{tpu_custom_call.1} parent=1 // pred_fallthru
      _
    %s44 = sadd.s32 0, 0
    %s45 = smul.u32 2, %s44
    %s46 = sadd.s32 0, 0
    %s47 = smul.u32 2, %s46
    %p48 = scmp.eq.s32.totalorder 0, 0
    // Predicated region
    $region18: #{tpu_custom_call.1} parent=1 // pred_check
      %p49 = pneg %p48
    $region19: #{tpu_custom_call.1} parent=1 // pred_check_branch
      %51 = sbr.rel (%p49) target = $region21
    $region20: #{tpu_custom_call.1} parent=1 // pred_region
      %52 = vst [vmem:[#allocation7] sm:$0xff] 0.0
      %53 = vst [vmem:[#allocation7 + $0x8] sm:$0xff] 0.0
      %54 = vst [vmem:[#allocation7 + $0x10] sm:$0xff] 0.0
    $region21: #{tpu_custom_call.1} parent=1 // pred_fallthru
      _
    %v55 = vld [vmem:[#allocation2] sm:$0xff]
    %v56 = vld [vmem:[#allocation2 + $0x8] sm:$0xff]
    %v57 = vld [vmem:[#allocation5] sm:$0xff]
    %v58 = vld [vmem:[#allocation5 + $0x8] sm:$0xff]
    %vm59 = vcmp.gt.f32.partialorder %v57, 0.5
    %vm60 = vcmp.gt.f32.partialorder %v58, 0.5
    %v61 = vsub.f32 1.0, %v55
    %v62 = vsub.f32 1.0, %v56
    %v63 = vsel %vm59, %v55, %v61
    %v64 = vsel %vm60, %v56, %v62
    %v65 = vlog2.pop %v63
    %v66 = vmul.f32 %v65, 0.6931472
    %v67 = vlog2.pop %v64
    %v68 = vmul.f32 %v67, 0.6931472
    %v69 = vmax.f32 %v66, -100.0
    %v70 = vmax.f32 %v68, -100.0
    %v71 = vsel %vm59, %v55, 0.0
    %v72 = vsel %vm60, %v56, 0.0
    %v73 = vadd.f32 %v55, %v57
    %v74 = vadd.f32 %v56, %v58
    %v75 = vld [vmem:[#allocation7] sm:$0xff]
    %v76 = vadd.f32 %v71, %v72
    %v77 = vadd.f32 %v75, %v76
    %78 = vst [vmem:[#allocation7] sm:$0xff] %v77
    %s79 = scalar_lea.vmem [#allocation7], 8
    %v80 = vld [vmem:[%s79] sm:$0xff]
    %v81 = vadd.f32 %v73, %v74
    %v82 = vadd.f32 %v80, %v81
    %83 = vst [vmem:[%s79] sm:$0xff] %v82
    %s84 = scalar_lea.vmem [#allocation7], 16
    %v85 = vld [vmem:[%s84] sm:$0xff]
    %v86 = vadd.f32 %v69, %v70
    %v87 = vadd.f32 %v85, %v86
    %88 = vst [vmem:[%s84] sm:$0xff] %v87
    // Predicated region
    $region22: #{tpu_custom_call.1} parent=1 // pred_check
      _
    $region23: #{tpu_custom_call.1} parent=1 // pred_check_branch
      %90 = sbr.rel (0) target = $region25
    $region24: #{tpu_custom_call.1} parent=1 // pred_region
      %s92 = ssub.s32 384, 384
      %93 = vsyncadd [#allocation4], %s92
      %s94 = sshll.u32 [#allocation7], 4
      %s95 = int_to_ptr.vmem [resolvable:$true] %s94
      %100 = dma.vmem_to_hbm [thread:$0]  %s95, 384, %s2, [#allocation4], 128, 128, 8
    $region25: #{tpu_custom_call.1} parent=1 // pred_fallthru
      _
    // Predicated region
    $region26: #{tpu_custom_call.1} parent=1 // pred_check
      _
    $region27: #{tpu_custom_call.1} parent=1 // pred_check_branch
      %102 = sbr.rel (0) target = $region29
    $region28: #{tpu_custom_call.1} parent=1 // pred_region
      %103 = dma.done [#allocation4], 384
    $region29: #{tpu_custom_call.1} parent=1 // pred_fallthru
      _
    %104 = vsyncpa [#allocation3], 1
    %105 = vsyncpa [#allocation6], 1
    %106 = vsyncpa [#allocation4], 1

</llo_original>
